<compile_context>
chip_gen: v7x
topology: tpu7x:2x2x1
jax: 0.10.0
libtpu: 0.0.40
codegen_flags: <defaults>
</compile_context>

<pallas_src>
import jax
import jax.numpy as jnp
from jax.experimental import pallas as pl
from jax.experimental.pallas import tpu as pltpu

# ---- static hyper-parameters -------------------------------------------------
B = 8                  # batch
HIN = 16               # raw input feature dim (into the fused stub model)
HIDDEN = 16            # hidden_dim of the inner model
COOR = 2               # coor_dim
D = COOR * HIDDEN      # classification-feature dim = 32
CLASS_NUM = 8
NUN = 4                # number of "unbrothers" per example (dead in the loss)
OUT_LANES = 128        # lane-dense output slab width (one f32 vreg tile)

# packed weight slab layout (rows):
#   rows [0 : HIN)            lanes [0 : 3*HIDDEN)  -> W_stack = [Wr | Wi | Wrad]
#   rows [HIN : HIN+D)        lanes [0 : CLASS_NUM) -> cls_w
#   row  [HIN+D]              lanes [0 : CLASS_NUM) -> cls_b
W_LANES = 3 * HIDDEN                       # 48
W_ROWS_USED = HIN + D + 1                  # 49
W_ROWS = ((W_ROWS_USED + 7) // 8) * 8      # 56 (8-aligned sublanes)

RADIUS_SCALE_FACTOR = 0.5   # self.model.radius_scale_factor
INIT_RADIUS = 1.0           # self.model.init_radius
EPS = 1e-9


# ---- fused Pallas kernel: stub model + linear head + all loss reductions -----
def cls_fused_kernel(x_ref, w_ref, out_ref):
    x = x_ref[...]                               # [3B, HIN]  (children|parents|brothers)
    w = w_ref[...]                               # [W_ROWS, W_LANES] packed weight slab

    w_stack = w[0:HIN, :]                        # [HIN, 3H] = [Wr | Wi | Wrad]
    y = jnp.dot(x, w_stack, preferred_element_type=jnp.float32)   # [3B, 3H]

    emb = jnp.tanh(y[:, 0:D])                    # [3B, D] == [tanh(x@Wr) | tanh(x@Wi)]
    radii = y[:, D:D + HIDDEN]                   # [3B, HIDDEN]
    # TODO(synk): radius head assumed linear (no tanh) in the synthetic stub model.

    feature = emb[0:B, :]                        # children  -> cat(real_c, img_c)
    _feature = emb[B:2 * B, :]                   # parents   -> cat(_real_c, _img_c)
    brothers_feature = emb[2 * B:3 * B, :]

    children_radii = radii[0:B, :]
    children_radii_true = radii[B:2 * B, :]

    # logits = Linear(feature)  (MXU matmul)
    cls_w = w[HIN:HIN + D, 0:CLASS_NUM]          # [D, CLASS_NUM]   (row 16, 8-aligned)
    cls_b = w[HIN + D:HIN + D + 1, 0:CLASS_NUM]  # [1, CLASS_NUM]   (row 48, 8-aligned)
    logits = jnp.dot(feature, cls_w,
                     preferred_element_type=jnp.float32) + cls_b   # [B, CLASS_NUM]

    # ---- per-row loss terms (lane reductions only) ---------------------------
    # loss_local term: ||cr - crt||_2 + ||feature - _feature + eps||_2
    nr = jnp.sqrt(jnp.sum((children_radii - children_radii_true) ** 2,
                          axis=-1, keepdims=True))                 # [B,1]
    nf = jnp.sqrt(jnp.sum((feature - _feature + EPS) ** 2,
                          axis=-1, keepdims=True))                 # [B,1]
    # loss_global term: 2/(2 - rsf) * init_radius - ||feature||_2
    const = 2.0 / (2.0 - RADIUS_SCALE_FACTOR) * INIT_RADIUS
    norm_f = jnp.sqrt(jnp.sum(feature ** 2, axis=-1, keepdims=True))  # [B,1]
    # loss_1 term: -log(sigmoid(<feature, brothers>)) == softplus(-dot)
    dotp = jnp.sum(feature * brothers_feature, axis=-1, keepdims=True)  # [B,1]
    softplus_neg = jnp.maximum(-dotp, 0.0) + jnp.log(1.0 + jnp.exp(-jnp.abs(dotp)))

    # ---- ONE fused batch reduction over a [B,4] lane pack --------------------
    terms = jnp.concatenate(
        [nr + nf,                                # loss_local per row
         softplus_neg,                           # loss_1 per row
         0.01 * (const - norm_f),                # 0.01 * loss_global per row
         jnp.zeros_like(nr)],                    # pad lane
        axis=-1)                                 # [B, 4]
    loss = jnp.sum(terms) / jnp.float32(B)       # loss_1 + loss_local + 0.01*loss_global

    # TODO(synk): loss_2 in the PyTorch code is dead (never returned); omitted.

    # Single lane-dense [B, 128] output slab: [ feature | logits | loss bcast | 0 pad ]
    loss_b = jnp.broadcast_to(loss, (B, CLASS_NUM))
    pad = jnp.zeros((B, OUT_LANES - (D + 2 * CLASS_NUM)), jnp.float32)
    out_ref[...] = jnp.concatenate([feature, logits, loss_b, pad], axis=-1)


# ---- jitted wrapper: stack activations, run kernel, slice the slab ------------
@jax.jit
def _cls_fused_jit(w_slab, children, parents, brothers):
    # One pre-stacked [3B, HIN] activation operand -> single input DMA.
    x_stack = jnp.concatenate([children, parents, brothers], axis=0)

    vmem = pl.BlockSpec(memory_space=pltpu.MemorySpace.VMEM)
    out = pl.pallas_call(
        cls_fused_kernel,
        out_shape=jax.ShapeDtypeStruct((B, OUT_LANES), jnp.float32),
        in_specs=[vmem, vmem],
        out_specs=vmem,
    )(x_stack, w_slab)

    # Slices stay inside this jit so they fuse with the custom-call output.
    feature = out[:, 0:D]
    logits = out[:, D:D + CLASS_NUM]
    loss = out[0, D + CLASS_NUM]
    return logits, loss, feature


# ---- deterministic synthetic inner-model parameters ---------------------------
def make_params(key):
    ks = jax.random.split(key, 3)
    scale = 0.1
    w_stack = scale * jax.random.normal(ks[0], (HIN, 3 * HIDDEN), jnp.float32)
    cls_w = scale * jax.random.normal(ks[1], (D, CLASS_NUM), jnp.float32)
    cls_b = scale * jax.random.normal(ks[2], (1, CLASS_NUM), jnp.float32)

    # Pack [Wr|Wi|Wrad], cls_w and cls_b into ONE padded constant weight slab.
    w_slab = jnp.zeros((W_ROWS, W_LANES), jnp.float32)
    w_slab = w_slab.at[0:HIN, 0:3 * HIDDEN].set(w_stack)
    w_slab = w_slab.at[HIN:HIN + D, 0:CLASS_NUM].set(cls_w)
    w_slab = w_slab.at[HIN + D:HIN + D + 1, 0:CLASS_NUM].set(cls_b)
    return {"w_slab": w_slab}


def cls_forward(params, children, brothers, parents, brothers_parents,
                unbrothers, need_loss=True):
    # TODO(synk): unbrothers / brothers_parents feed only the dead loss_2 /
    # unbrothers_feature in the PyTorch reference, so they are not consumed.
    logits, loss, feature = _cls_fused_jit(
        params["w_slab"], children, parents, brothers)
    if need_loss:
        return logits, loss, feature
    return logits, feature


if __name__ == "__main__":
    key = jax.random.PRNGKey(0)
    kp, k1, k2, k3, k4, k5 = jax.random.split(key, 6)
    params = make_params(kp)

    children = jax.random.normal(k1, (B, HIN), jnp.float32)
    brothers = jax.random.normal(k2, (B, HIN), jnp.float32)
    parents = jax.random.normal(k3, (B, HIN), jnp.float32)
    brothers_parents = jax.random.normal(k4, (B, HIN), jnp.float32)
    unbrothers = jax.random.normal(k5, (B, NUN, HIN), jnp.float32)

    logits, loss, feature = cls_forward(params, children, brothers, parents,
                                        brothers_parents, unbrothers,
                                        need_loss=True)
    jax.block_until_ready((logits, loss, feature))
    assert logits.shape == (B, CLASS_NUM)
    assert feature.shape == (B, D)
    assert loss.shape == ()
    assert bool(jnp.isfinite(loss))
    print("KERNEL_OK")
</pallas_src>

<mosaic_0001>
module attributes {stable_mosaic.version = 11 : i64} {
  func.func @cls_fused_kernel(%arg0: memref<24x16xf32, #tpu.memory_space<vmem>>, %arg1: memref<56x48xf32, #tpu.memory_space<vmem>>, %arg2: memref<8x128xf32, #tpu.memory_space<vmem>>) attributes {dimension_semantics = [], scalar_prefetch = 0 : i64, scratch_operands = 0 : i64, tpu.core_type = #tpu.core_type<tc>} {
    %c0 = arith.constant 0 : index
    %c0_0 = arith.constant 0 : index
    %0 = vector.load %arg0[%c0, %c0_0] : memref<24x16xf32, #tpu.memory_space<vmem>>, vector<24x16xf32>
    %c0_1 = arith.constant 0 : index
    %c0_2 = arith.constant 0 : index
    %1 = vector.load %arg1[%c0_1, %c0_2] : memref<56x48xf32, #tpu.memory_space<vmem>>, vector<56x48xf32>
    %2 = vector.extract_strided_slice %1 {offsets = [0, 0], sizes = [16, 48], strides = [1, 1]} : vector<56x48xf32> to vector<16x48xf32>
    %cst = arith.constant dense<0.000000e+00> : vector<24x48xf32>
    %3 = tpu.matmul %0, %2, %cst {dimension_numbers = #tpu.dot_dimension_numbers<[1], [0], [0], [1], [0, 0, 1, 1], [], []>} : vector<24x16xf32>, vector<16x48xf32>, vector<24x48xf32> -> vector<24x48xf32>
    %4 = vector.extract_strided_slice %3 {offsets = [0, 0], sizes = [24, 32], strides = [1, 1]} : vector<24x48xf32> to vector<24x32xf32>
    %5 = math.tanh %4 : vector<24x32xf32>
    %6 = vector.extract_strided_slice %3 {offsets = [0, 32], sizes = [24, 16], strides = [1, 1]} : vector<24x48xf32> to vector<24x16xf32>
    %7 = vector.extract_strided_slice %5 {offsets = [0, 0], sizes = [8, 32], strides = [1, 1]} : vector<24x32xf32> to vector<8x32xf32>
    %8 = vector.extract_strided_slice %5 {offsets = [8, 0], sizes = [8, 32], strides = [1, 1]} : vector<24x32xf32> to vector<8x32xf32>
    %9 = vector.extract_strided_slice %5 {offsets = [16, 0], sizes = [8, 32], strides = [1, 1]} : vector<24x32xf32> to vector<8x32xf32>
    %10 = vector.extract_strided_slice %6 {offsets = [0, 0], sizes = [8, 16], strides = [1, 1]} : vector<24x16xf32> to vector<8x16xf32>
    %11 = vector.extract_strided_slice %6 {offsets = [8, 0], sizes = [8, 16], strides = [1, 1]} : vector<24x16xf32> to vector<8x16xf32>
    %12 = vector.extract_strided_slice %1 {offsets = [16, 0], sizes = [32, 8], strides = [1, 1]} : vector<56x48xf32> to vector<32x8xf32>
    %13 = vector.extract_strided_slice %1 {offsets = [48, 0], sizes = [1, 8], strides = [1, 1]} : vector<56x48xf32> to vector<1x8xf32>
    %cst_3 = arith.constant dense<0.000000e+00> : vector<8x8xf32>
    %14 = tpu.matmul %7, %12, %cst_3 {dimension_numbers = #tpu.dot_dimension_numbers<[1], [0], [0], [1], [0, 0, 1, 1], [], []>} : vector<8x32xf32>, vector<32x8xf32>, vector<8x8xf32> -> vector<8x8xf32>
    %15 = vector.broadcast %13 : vector<1x8xf32> to vector<8x8xf32>
    %16 = arith.addf %14, %15 : vector<8x8xf32>
    %17 = arith.subf %10, %11 : vector<8x16xf32>
    %18 = arith.mulf %17, %17 : vector<8x16xf32>
    %cst_4 = arith.constant dense<0.000000e+00> : vector<8xf32>
    %19 = vector.multi_reduction <add>, %18, %cst_4 [1] : vector<8x16xf32> to vector<8xf32>
    %20 = vector.shape_cast %19 : vector<8xf32> to vector<8x1xf32>
    %21 = math.sqrt %20 : vector<8x1xf32>
    %22 = arith.subf %7, %8 : vector<8x32xf32>
    %cst_5 = arith.constant 9.99999971E-10 : f32
    %23 = vector.broadcast %cst_5 : f32 to vector<8x32xf32>
    %24 = arith.addf %22, %23 : vector<8x32xf32>
    %25 = arith.mulf %24, %24 : vector<8x32xf32>
    %cst_6 = arith.constant dense<0.000000e+00> : vector<8xf32>
    %26 = vector.multi_reduction <add>, %25, %cst_6 [1] : vector<8x32xf32> to vector<8xf32>
    %27 = vector.shape_cast %26 : vector<8xf32> to vector<8x1xf32>
    %28 = math.sqrt %27 : vector<8x1xf32>
    %29 = arith.mulf %7, %7 : vector<8x32xf32>
    %cst_7 = arith.constant dense<0.000000e+00> : vector<8xf32>
    %30 = vector.multi_reduction <add>, %29, %cst_7 [1] : vector<8x32xf32> to vector<8xf32>
    %31 = vector.shape_cast %30 : vector<8xf32> to vector<8x1xf32>
    %32 = math.sqrt %31 : vector<8x1xf32>
    %33 = arith.mulf %7, %9 : vector<8x32xf32>
    %cst_8 = arith.constant dense<0.000000e+00> : vector<8xf32>
    %34 = vector.multi_reduction <add>, %33, %cst_8 [1] : vector<8x32xf32> to vector<8xf32>
    %35 = vector.shape_cast %34 : vector<8xf32> to vector<8x1xf32>
    %cst_9 = arith.constant 0.000000e+00 : f32
    %36 = vector.broadcast %cst_9 : f32 to vector<8x1xf32>
    %37 = arith.subf %36, %35 : vector<8x1xf32>
    %cst_10 = arith.constant 0.000000e+00 : f32
    %38 = vector.broadcast %cst_10 : f32 to vector<8x1xf32>
    %39 = arith.maximumf %37, %38 : vector<8x1xf32>
    %40 = math.absf %35 : vector<8x1xf32>
    %cst_11 = arith.constant 0.000000e+00 : f32
    %41 = vector.broadcast %cst_11 : f32 to vector<8x1xf32>
    %42 = arith.subf %41, %40 : vector<8x1xf32>
    %43 = math.exp %42 : vector<8x1xf32>
    %cst_12 = arith.constant 1.000000e+00 : f32
    %44 = vector.broadcast %cst_12 : f32 to vector<8x1xf32>
    %45 = arith.addf %44, %43 : vector<8x1xf32>
    %46 = math.log %45 : vector<8x1xf32>
    %47 = arith.addf %39, %46 : vector<8x1xf32>
    %48 = arith.addf %21, %28 : vector<8x1xf32>
    %cst_13 = arith.constant 1.33333337 : f32
    %49 = vector.broadcast %cst_13 : f32 to vector<8x1xf32>
    %50 = arith.subf %49, %32 : vector<8x1xf32>
    %cst_14 = arith.constant 0.00999999977 : f32
    %51 = vector.broadcast %cst_14 : f32 to vector<8x1xf32>
    %52 = arith.mulf %51, %50 : vector<8x1xf32>
    %cst_15 = arith.constant 0.000000e+00 : f32
    %53 = vector.broadcast %cst_15 : f32 to vector<8x1xf32>
    %54 = tpu.concatenate %48, %47, %52, %53 in 1 : vector<8x1xf32>, vector<8x1xf32>, vector<8x1xf32>, vector<8x1xf32> -> vector<8x4xf32>
    %55 = vector.shape_cast %54 : vector<8x4xf32> to vector<1x8x4xf32>
    %cst_16 = arith.constant dense<0.000000e+00> : vector<1xf32>
    %56 = vector.multi_reduction <add>, %55, %cst_16 [1, 2] : vector<1x8x4xf32> to vector<1xf32>
    %57 = vector.shape_cast %56 : vector<1xf32> to vector<1x1x1xf32>
    %58 = vector.extract %57[0, 0, 0] : f32 from vector<1x1x1xf32>
    %cst_17 = arith.constant 8.000000e+00 : f32
    %59 = arith.divf %58, %cst_17 : f32
    %60 = vector.broadcast %59 : f32 to vector<8x8xf32>
    %cst_18 = arith.constant 0.000000e+00 : f32
    %61 = vector.broadcast %cst_18 : f32 to vector<8x80xf32>
    %62 = tpu.concatenate %7, %16, %60, %61 in 1 : vector<8x32xf32>, vector<8x8xf32>, vector<8x8xf32>, vector<8x80xf32> -> vector<8x128xf32>
    %c0_19 = arith.constant 0 : index
    %c0_20 = arith.constant 0 : index
    %63 = vector.load %arg2[%c0_19, %c0_20] : memref<8x128xf32, #tpu.memory_space<vmem>>, vector<8x128xf32>
    tpu.vector_store %arg2[%c0_19, %c0_20], %62 {strides = array<i32>} : memref<8x128xf32, #tpu.memory_space<vmem>>, vector<8x128xf32>,
    return
  }
}

</mosaic_0001>

<llo_original>
// kernel: _cls_fused_jit.1
$region0: #{_cls_fused_jit.1}
  #allocation0 [shape = 'u32[]', space=smem, size = 0x4, offset = 0x4, fixed_abs, tag = 'smem constant byte address 0x4 - core index']
  #allocation1 [shape = 'u32[144,128]{1,0:T(1,128)}', space=vmem, size = 0x12000, scoped, tag = 'internal scratch']
  %s0 = inlined_call_operand.vmem [shape: f32[24,16], index: 0, kind: input, shape index: {}]
  %s1 = inlined_call_operand.vmem [shape: f32[56,48], index: 1, kind: input, shape index: {}]
  %s2 = inlined_call_operand.vmem [shape: f32[8,128], index: 2, kind: output, shape index: {}]
  %s3 = sld [smem:[#allocation0]]
  $region18: #{_cls_fused_jit.1} parent=0
    _
  %s5 = ssub.s32 1, %s3
  %s6 = scalar_select 0, %s5, %s3
  // Predicated region
  $region2: #{_cls_fused_jit.1} parent=0 // pred_check
    _
  $region3: #{_cls_fused_jit.1} parent=0 // pred_check_branch
    %8 = sbr.rel (0) target = $region5
  $region4: #{_cls_fused_jit.1} parent=0 // pred_region
    _
  $region5: #{_cls_fused_jit.1} parent=0 // pred_fallthru
    _
  // Predicated region
  $region6: #{_cls_fused_jit.1} parent=0 // pred_check
    _
  $region7: #{_cls_fused_jit.1} parent=0 // pred_check_branch
    %10 = sbr.rel (0) target = $region9
  $region8: #{_cls_fused_jit.1} parent=0 // pred_region
    _
  $region9: #{_cls_fused_jit.1} parent=0 // pred_fallthru
    _
  %v11 = vld [vmem:[%s0] sm:$0xff]
  %v12 = vld [vmem:[%s0 + $0x8] sm:$0xff]
  %v13 = vld [vmem:[%s0 + $0x10] sm:$0xff]
  %v14 = vld [vmem:[%s1] sm:$0xff]
  %v15 = vld [vmem:[%s1 + $0x8] sm:$0xff]
  %v16 = vld [vmem:[%s1 + $0x10] sm:$0xff]
  %v17 = vld [vmem:[%s1 + $0x18] sm:$0xff]
  %v18 = vld [vmem:[%s1 + $0x20] sm:$0xff]
  %v19 = vld [vmem:[%s1 + $0x28] sm:$0xff]
  %v20 = vld [vmem:[%s1 + $0x30] sm:$0xff]
  %vm21 = vcmask 130048
  %v23 = vsel %vm21, %v11, 0
  %v26 = vsel %vm21, %v12, 0
  %v29 = vsel %vm21, %v13, 0
  %31 = vmatprep.subr.mxu0 0.0
  %32 = vmatpush1.msra.mxu0 %v14
  %33 = vmatprep.subr.mxu0 0.0
  %34 = vmatpush1.msra.mxu0 %v15
  %35 = vmatprep.subr.mxu0 0.0
  %36 = vmatpush1.msra.mxu0 0.0
  %37 = vmatprep.subr.mxu0 0.0
  %38 = vmatpush1.msra.mxu0 0.0
  %39 = vmatprep.subr.mxu0 0.0
  %40 = vmatpush1.msra.mxu0 0.0
  %41 = vmatprep.subr.mxu0 0.0
  %42 = vmatpush1.msra.mxu0 0.0
  %43 = vmatprep.subr.mxu0 0.0
  %44 = vmatpush1.msra.mxu0 0.0
  %45 = vmatprep.subr.mxu0 0.0
  %46 = vmatpush1.msra.mxu0 0.0
  %47 = vmatprep.subr.mxu0 0.0
  %48 = vmatpush1.msra.mxu0 0.0
  %49 = vmatprep.subr.mxu0 0.0
  %50 = vmatpush1.msra.mxu0 0.0
  %51 = vmatprep.subr.mxu0 0.0
  %52 = vmatpush1.msra.mxu0 0.0
  %53 = vmatprep.subr.mxu0 0.0
  %54 = vmatpush1.msra.mxu0 0.0
  %55 = vmatprep.subr.mxu0 0.0
  %56 = vmatpush1.msra.mxu0 0.0
  %57 = vmatprep.subr.mxu0 0.0
  %58 = vmatpush1.msra.mxu0 0.0
  %59 = vmatprep.subr.mxu0 0.0
  %60 = vmatpush1.msra.mxu0 0.0
  %61 = vmatprep.subr.mxu0 0.0
  %62 = vmatpush1.msra.mxu0 0.0
  %63 = vmatprep.subr.mxu0 0.0
  %64 = vmatpush1.msra.mxu0 0.0
  %65 = vmatprep.subr.mxu0 0.0
  %66 = vmatpush1.msra.mxu0 0.0
  %67 = vmatprep.subr.mxu0 0.0
  %68 = vmatpush1.msra.mxu0 0.0
  %69 = vmatprep.subr.mxu0 0.0
  %70 = vmatpush1.msra.mxu0 0.0
  %71 = vmatprep.subr.mxu0 0.0
  %72 = vmatpush1.msra.mxu0 0.0
  %73 = vmatprep.subr.mxu0 0.0
  %74 = vmatpush1.msra.mxu0 0.0
  %75 = vmatprep.subr.mxu0 0.0
  %76 = vmatpush1.msra.mxu0 0.0
  %77 = vmatprep.subr.mxu0 0.0
  %78 = vmatpush1.msra.mxu0 0.0
  %79 = vmatprep.subr.mxu0 0.0
  %80 = vmatpush1.msra.mxu0 0.0
  %81 = vmatprep.subr.mxu0 0.0
  %82 = vmatpush1.msra.mxu0 0.0
  %83 = vmatprep.subr.mxu0 0.0
  %84 = vmatpush1.msra.mxu0 0.0
  %85 = vmatprep.subr.mxu0 0.0
  %86 = vmatpush1.msra.mxu0 0.0
  %87 = vmatprep.subr.mxu0 0.0
  %88 = vmatpush1.msra.mxu0 0.0
  %89 = vmatprep.subr.mxu0 0.0
  %90 = vmatpush1.msra.mxu0 0.0
  %91 = vmatprep.subr.mxu0 0.0
  %92 = vmatpush1.msra.mxu0 0.0
  %93 = vmatprep.subr.mxu0 0.0
  %94 = vmatpush1.msra.mxu0 0.0
  %95 = vmatprep.mubr.f32.mxu0 0.0
  %96 = vmatmul.mubr.f32.gmra.mrb[0].mxu0 %v23
  %v97 = vpop.f32.mrb[0].mxu0
  %v98 = vadd.f32 0.0, %v97
  %v99 = vpop.f32.mrb[0].mxu0
  %100 = vmatprep.mubr.f32.mxu0 0.0
  %101 = vmatmul.mubr.f32.gmra.mrb[0].mxu0 %v26
  %v102 = vpop.f32.mrb[0].mxu0
  %v103 = vadd.f32 0.0, %v102
  %v104 = vpop.f32.mrb[0].mxu0
  %105 = vmatprep.mubr.f32.mxu0 0.0
  %106 = vmatmul.mubr.f32.gmra.mrb[0].mxu0 %v29
  %v107 = vpop.f32.mrb[0].mxu0
  %v108 = vadd.f32 0.0, %v107
  %v109 = vpop.f32.mrb[0].mxu0
  %110 = vdwg.mxu0
  %v111 = vtanh.pop %v98
  %v112 = vtanh.pop %v103
  %v113 = vtanh.pop %v108
  %v114 = vlaneseq
  %v115 = vshrl.u32 %v114, 7
  %v116 = vsub.s32 0, %v115
  %v117 = vrot.slane %v20, %v116
  %vm118 = vcmask 261120
  %v120 = vsel %vm118, %v111, 0
  %122 = vmatprep.subr.mxu0 0.0
  %123 = vmatpush1.msra.mxu0 %v16
  %124 = vmatprep.subr.mxu0 0.0
  %125 = vmatpush1.msra.mxu0 %v17
  %126 = vmatprep.subr.mxu0 0.0
  %127 = vmatpush1.msra.mxu0 %v18
  %128 = vmatprep.subr.mxu0 0.0
  %129 = vmatpush1.msra.mxu0 %v19
  %130 = vmatprep.subr.mxu0 0.0
  %131 = vmatpush1.msra.mxu0 0.0
  %132 = vmatprep.subr.mxu0 0.0
  %133 = vmatpush1.msra.mxu0 0.0
  %134 = vmatprep.subr.mxu0 0.0
  %135 = vmatpush1.msra.mxu0 0.0
  %136 = vmatprep.subr.mxu0 0.0
  %137 = vmatpush1.msra.mxu0 0.0
  %138 = vmatprep.subr.mxu0 0.0
  %139 = vmatpush1.msra.mxu0 0.0
  %140 = vmatprep.subr.mxu0 0.0
  %141 = vmatpush1.msra.mxu0 0.0
  %142 = vmatprep.subr.mxu0 0.0
  %143 = vmatpush1.msra.mxu0 0.0
  %144 = vmatprep.subr.mxu0 0.0
  %145 = vmatpush1.msra.mxu0 0.0
  %146 = vmatprep.subr.mxu0 0.0
  %147 = vmatpush1.msra.mxu0 0.0
  %148 = vmatprep.subr.mxu0 0.0
  %149 = vmatpush1.msra.mxu0 0.0
  %150 = vmatprep.subr.mxu0 0.0
  %151 = vmatpush1.msra.mxu0 0.0
  %152 = vmatprep.subr.mxu0 0.0
  %153 = vmatpush1.msra.mxu0 0.0
  %154 = vmatprep.subr.mxu0 0.0
  %155 = vmatpush1.msra.mxu0 0.0
  %156 = vmatprep.subr.mxu0 0.0
  %157 = vmatpush1.msra.mxu0 0.0
  %158 = vmatprep.subr.mxu0 0.0
  %159 = vmatpush1.msra.mxu0 0.0
  %160 = vmatprep.subr.mxu0 0.0
  %161 = vmatpush1.msra.mxu0 0.0
  %162 = vmatprep.subr.mxu0 0.0
  %163 = vmatpush1.msra.mxu0 0.0
  %164 = vmatprep.subr.mxu0 0.0
  %165 = vmatpush1.msra.mxu0 0.0
  %166 = vmatprep.subr.mxu0 0.0
  %167 = vmatpush1.msra.mxu0 0.0
  %168 = vmatprep.subr.mxu0 0.0
  %169 = vmatpush1.msra.mxu0 0.0
  %170 = vmatprep.subr.mxu0 0.0
  %171 = vmatpush1.msra.mxu0 0.0
  %172 = vmatprep.subr.mxu0 0.0
  %173 = vmatpush1.msra.mxu0 0.0
  %174 = vmatprep.subr.mxu0 0.0
  %175 = vmatpush1.msra.mxu0 0.0
  %176 = vmatprep.subr.mxu0 0.0
  %177 = vmatpush1.msra.mxu0 0.0
  %178 = vmatprep.subr.mxu0 0.0
  %179 = vmatpush1.msra.mxu0 0.0
  %180 = vmatprep.subr.mxu0 0.0
  %181 = vmatpush1.msra.mxu0 0.0
  %182 = vmatprep.subr.mxu0 0.0
  %183 = vmatpush1.msra.mxu0 0.0
  %184 = vmatprep.subr.mxu0 0.0
  %185 = vmatpush1.msra.mxu0 0.0
  %186 = vmatprep.mubr.f32.mxu0 0.0
  %187 = vmatmul.mubr.f32.gmra.mrb[0].mxu0 %v120
  %v188 = vpop.f32.mrb[0].mxu0
  %v189 = vadd.f32 %v117, %v188
  %v190 = vpop.f32.mrb[0].mxu0
  %191 = vdwg.mxu0
  %v192 = vsub.f32 %v98, %v103
  %v193 = vmul.f32 %v192, %v192
  %195 = vrot.lane.b32.xlu0 %v193, 96
  %v196 = vpop.permute.xlu0 %195
  %v198 = vsel %vm21, %v196, 0.0
  %199 = vadd.xlane.f32.xlu0 %v198
  %v200 = vpop.xlane.xlu0 %199
  %v201 = vrsqrt.pop %v200
  %v202 = vmul.f32 %v200, %v201
  %vm203 = vcmp.eq.f32.partialorder %v200, inf
  %v204 = vsel %vm203, %v200, %v202
  %vm205 = vcmp.eq.f32.partialorder %v200, 0.0
  %v206 = vand.u32 %v200, 2147483648
  %v207 = vsel %vm205, %v206, %v204
  %v208 = vsub.f32 %v111, %v112
  %v209 = vadd.f32 %v208, 1e-09
  %v210 = vmul.f32 %v209, %v209
  %v211 = vsel %vm118, %v210, 0.0
  %212 = vadd.xlane.f32.xlu0 %v211
  %v213 = vpop.xlane.xlu0 %212
  %v214 = vrsqrt.pop %v213
  %v215 = vmul.f32 %v213, %v214
  %vm216 = vcmp.eq.f32.partialorder %v213, inf
  %v217 = vsel %vm216, %v213, %v215
  %vm218 = vcmp.eq.f32.partialorder %v213, 0.0
  %v219 = vand.u32 %v213, 2147483648
  %v220 = vsel %vm218, %v219, %v217
  %v221 = vmul.f32 %v111, %v111
  %v222 = vsel %vm118, %v221, 0.0
  %223 = vadd.xlane.f32.xlu0 %v222
  %v224 = vpop.xlane.xlu0 %223
  %v225 = vrsqrt.pop %v224
  %v226 = vmul.f32 %v224, %v225
  %vm227 = vcmp.eq.f32.partialorder %v224, inf
  %v228 = vsel %vm227, %v224, %v226
  %vm229 = vcmp.eq.f32.partialorder %v224, 0.0
  %v230 = vand.u32 %v224, 2147483648
  %v231 = vsel %vm229, %v230, %v228
  %v232 = vmul.f32 %v111, %v113
  %v233 = vsel %vm118, %v232, 0.0
  %234 = vadd.xlane.f32.xlu0 %v233
  %v235 = vpop.xlane.xlu0 %234
  %v236 = vsub.f32 0.0, %v235
  %v237 = vmax.f32 %v236, 0.0
  %v238 = vand.u32 2147483647, %v235
  %v239 = vsub.f32 0.0, %v238
  %v240 = vmul.f32 %v239, 1.442695
  %v241 = vpow.pop %v240
  %v242 = vadd.f32 %v241, 1.0
  %v243 = vlog2.pop %v242
  %v244 = vmul.f32 %v243, 0.6931472
  %v245 = vadd.f32 %v237, %v244
  %v246 = vadd.f32 %v207, %v220
  %v247 = vsub.f32 1.3333334, %v231
  %v248 = vmul.f32 %v247, 0.01
  %vm249 = vcmask 7168
  %v250 = vsel %vm249, %v246, %v245
  %vm251 = vcmask 15360
  %v252 = vsel %vm251, %v250, %v248
  %vm253 = vcmask 23552
  %v254 = vsel %vm253, %v252, 0.0
  %vm255 = vcmask 31744
  %v256 = vsel %vm255, %v254, 0.0
  %257 = vadd.xlane.f32.xlu0 %v256
  %v258 = vpop.xlane.xlu0 %257
  %v259 = vrot.slane %v258, 4
  %v260 = vadd.f32 %v258, %v259
  %v261 = vrot.slane %v260, 2
  %v262 = vadd.f32 %v260, %v261
  %v263 = vrot.slane %v262, 1
  %v264 = vadd.f32 %v262, %v263
  %s265 = vtos %v264
  %v266 = vrcp.pop 8.0
  %s267 = vtos %v266
  %s268 = smul.f32 %s265, %s267
  %v269 = vstv %s268
  %271 = vrot.lane.b32.xlu0 %v189, 32
  %v272 = vpop.permute.xlu0 %271
  %v274 = vsel %vm118, %v111, %v272
  %vm275 = vcmask 326656
  %v276 = vsel %vm275, %v274, %v269
  %vm277 = vcmask 392192
  %v278 = vsel %vm277, %v276, 0.0
  %279 = vst [vmem:[%s2] sm:$0xff] %v278
  // Predicated region
  $region10: #{_cls_fused_jit.1} parent=0 // pred_check
    _
  $region11: #{_cls_fused_jit.1} parent=0 // pred_check_branch
    %281 = sbr.rel (0) target = $region13
  $region12: #{_cls_fused_jit.1} parent=0 // pred_region
    _
  $region13: #{_cls_fused_jit.1} parent=0 // pred_fallthru
    _
  // Predicated region
  $region14: #{_cls_fused_jit.1} parent=0 // pred_check
    _
  $region15: #{_cls_fused_jit.1} parent=0 // pred_check_branch
    %283 = sbr.rel (0) target = $region17
  $region16: #{_cls_fused_jit.1} parent=0 // pred_region
    _
  $region17: #{_cls_fused_jit.1} parent=0 // pred_fallthru
    _

</llo_original>
